<compile_context>
chip_gen: v5e
topology: v5e:2x2
jax: 0.10.0
libtpu: 0.0.40
codegen_flags: <defaults>
</compile_context>

<pallas_src>
import functools

import jax
import jax.numpy as jnp
from jax.experimental import pallas as pl
from jax.experimental.pallas import tpu as pltpu


def _round_up(x, m):
    return (x + m - 1) // m * m


# ----------------------------------------------------------------------------
# Pallas kernel: fused SuperReLoRA linear for one (i, j) output tile,
# K innermost.
#   per k:       acc += bf16(x_tile) @ Wt_tile            (MXU, f32 acc)
#   at k == last: out = relu?(acc + xa_tile @ (scale*B^T)_tile + bias)
# ----------------------------------------------------------------------------
def _superrelora_linear_kernel(x_ref, xa_ref, wt_ref, b_ref, bmt_ref, o_ref,
                               acc_ref, *, fuse_relu):
    k = pl.program_id(2)

    @pl.when(k == 0)
    def _init():
        acc_ref[...] = jnp.zeros_like(acc_ref)

    # Base frozen linear partial sum: bf16 x bf16 on the MXU, f32 accumulate.
    x = x_ref[...].astype(jnp.bfloat16)                       # (tm, tk)
    acc_ref[...] += jnp.dot(x, wt_ref[...],
                            preferred_element_type=jnp.float32)  # (tm, tn)

    @pl.when(k == pl.num_programs(2) - 1)
    def _finalize():
        # LoRA up-projection once per output tile; the down-projection and
        # the alpha/r scaling were done outside the kernel (see wrapper).
        lora = jnp.dot(xa_ref[...], bmt_ref[...],
                       preferred_element_type=jnp.float32)     # (tm, tn)
        out = acc_ref[...] + lora + b_ref[...]                 # bias broadcasts
        if fuse_relu:
            out = jnp.maximum(out, 0.0)
        o_ref[...] = out.astype(o_ref.dtype)


def superrelora_linear(x, wt, b, a, bmt, *, fuse_relu=False,
                       tm_cap=512, tn_cap=512, tk_cap=1024):
    """y = x @ W^T + b + (alpha/r) * (x @ A^T) @ B^T  (optionally + ReLU).

    x:   (M, K) f32
    wt:  (K, N) bf16   -- frozen W pre-transposed + cast offline
    b:   (N,)   f32
    a:   (r, K) f32    -- LoRA down
    bmt: (r, N) f32    -- (alpha/r) * B^T, scale folded offline
    ->   (M, N) f32
    """
    M, K = x.shape
    _, N = wt.shape
    rr = bmt.shape[0]
    out_dtype = x.dtype

    # LoRA down-projection hoisted out of the kernel: (M, r) is tiny and would
    # otherwise be recomputed (at full MXU-pass cost) for every (j, k) step.
    xa = jnp.dot(x, a.T, preferred_element_type=jnp.float32)   # (M, r)

    # Tile selection: full-M tiles when M is small (GEMV/decode regime -> each
    # W block is DMA'd exactly once), (8, 128)-aligned, caps chosen so the
    # double-buffered working set stays well inside v7x's 64 MiB VMEM while
    # still being large on v5e/v6e (128 MiB).
    tm = min(tm_cap, _round_up(M, 8))
    tn = min(tn_cap, _round_up(N, 128))
    tk = min(tk_cap, _round_up(K, 128))
    Mp, Np, Kp = _round_up(M, tm), _round_up(N, tn), _round_up(K, tk)
    rr_p = _round_up(rr, 8)

    # Zero-pad to tile multiples (exact: padded rows/cols contribute nothing).
    if (Mp, Kp) != (M, K):
        x = jnp.pad(x, ((0, Mp - M), (0, Kp - K)))
    if (Kp, Np) != (K, N):
        wt = jnp.pad(wt, ((0, Kp - K), (0, Np - N)))
    b2 = b.reshape(1, N)
    if Np != N:
        b2 = jnp.pad(b2, ((0, 0), (0, Np - N)))
    if (Mp, rr_p) != (M, rr):
        xa = jnp.pad(xa, ((0, Mp - M), (0, rr_p - rr)))
    if (rr_p, Np) != (rr, N):
        bmt = jnp.pad(bmt, ((0, rr_p - rr), (0, Np - N)))

    grid = (Mp // tm, Np // tn, Kp // tk)
    kernel = functools.partial(_superrelora_linear_kernel, fuse_relu=fuse_relu)

    # TODO(synk): on v7x, store the frozen W in fp8 (native MXU fp8, no int8)
    # and dequant in-kernel; sweep pipeline_mode=pl.Buffered(3) on x/W specs
    # once the per-step compute is this cheap.
    out = pl.pallas_call(
        kernel,
        out_shape=jax.ShapeDtypeStruct((Mp, Np), out_dtype),
        grid_spec=pltpu.PrefetchScalarGridSpec(
            num_scalar_prefetch=0,
            grid=grid,
            in_specs=[
                pl.BlockSpec((tm, tk), lambda i, j, k: (i, k)),      # x
                pl.BlockSpec((tm, rr_p), lambda i, j, k: (i, 0)),    # x @ A^T
                pl.BlockSpec((tk, tn), lambda i, j, k: (k, j)),      # W^T bf16
                pl.BlockSpec((1, tn), lambda i, j, k: (0, j)),       # bias
                pl.BlockSpec((rr_p, tn), lambda i, j, k: (0, j)),    # scale*B^T
            ],
            out_specs=pl.BlockSpec((tm, tn), lambda i, j, k: (i, j)),
            scratch_shapes=[pltpu.VMEM((tm, tn), jnp.float32)],      # accumulator
        ),
        compiler_params=pltpu.CompilerParams(
            dimension_semantics=("parallel", "parallel", "arbitrary"),
            vmem_limit_bytes=48 << 20,   # safe on v7x (64 MiB/TC), ample elsewhere
        ),
    )(x, xa, wt, b2, bmt)

    if (Mp, Np) != (M, N):
        out = out[:M, :N]
    return out


# ----------------------------------------------------------------------------
# One-time parameter preparation (frozen weights => zero per-step cost):
#   W -> W^T in bf16, B -> (alpha/r) * B^T in f32, A kept (r, K) f32.
# ----------------------------------------------------------------------------
def prepare_superrelora_params(params, *, alpha, r):
    scale = float(alpha) / float(r)
    prep = {}
    for l in ("1", "2"):
        prep["wt" + l] = params["w" + l].T.astype(jnp.bfloat16)            # (K, N)
        prep["b" + l] = params["b" + l].astype(jnp.float32)                # (N,)
        prep["a" + l] = params["a" + l].astype(jnp.float32)                # (r, K)
        prep["bmt" + l] = (scale * params["bm" + l].T).astype(jnp.float32)  # (r, N)
    return prep


# ----------------------------------------------------------------------------
# "Base model" whose Linear layers have been patched into SuperReLoRALinear:
#   Linear(H -> H) -> ReLU -> Linear(H -> H)
# ----------------------------------------------------------------------------
def superrelora_model_forward(x, prep):
    """x: (B, S, H) -> (B, S, H)."""
    B, S, H = x.shape
    xf = x.reshape(B * S, H)
    # First patched linear; the inter-layer ReLU is fused into its epilogue.
    h = superrelora_linear(xf, prep["wt1"], prep["b1"], prep["a1"],
                           prep["bmt1"], fuse_relu=True)
    # TODO(synk): fuse both layers into one pallas_call when M*H fits in VMEM
    # (or at minimum emit h in bf16) to avoid the inter-layer HBM round trip.
    y = superrelora_linear(h, prep["wt2"], prep["b2"], prep["a2"],
                           prep["bmt2"], fuse_relu=False)
    return y.reshape(B, S, H)


# Pure-JAX reference mirroring the kernel's numerics (bf16 x/W on the base
# path, f32 LoRA path with scale folded into B^T).
def _reference_forward(x, params, *, alpha, r):
    scale = alpha / r

    def lin(xf, w, b, a, bm):
        xq = xf.astype(jnp.bfloat16).astype(jnp.float32)
        wq = w.astype(jnp.bfloat16).astype(jnp.float32)
        base = xq @ wq.T + b[None, :]
        lora = (xf @ a.T) @ (scale * bm.T)
        return base + lora

    B, S, H = x.shape
    xf = x.reshape(B * S, H)
    h = jnp.maximum(
        lin(xf, params["w1"], params["b1"], params["a1"], params["bm1"]), 0.0)
    y = lin(h, params["w2"], params["b2"], params["a2"], params["bm2"])
    return y.reshape(B, S, H)


if __name__ == "__main__":
    # Small shapes consistent with the module: batch=2, seq=8, hidden=32.
    B, S, H = 2, 8, 32
    R, ALPHA = 8, 32  # LoRA rank / alpha

    key = jax.random.PRNGKey(0)
    ks = jax.random.split(key, 9)

    params = {
        # Frozen base weights copied from the original nn.Linear layers.
        "w1": jax.random.normal(ks[0], (H, H), jnp.float32) * 0.1,
        "b1": jax.random.normal(ks[1], (H,), jnp.float32) * 0.1,
        "w2": jax.random.normal(ks[2], (H, H), jnp.float32) * 0.1,
        "b2": jax.random.normal(ks[3], (H,), jnp.float32) * 0.1,
        # LoRA factors (B would normally init to zero; use non-zero values so
        # the low-rank path is actually exercised).
        "a1": jax.random.normal(ks[4], (R, H), jnp.float32) * 0.05,
        "bm1": jax.random.normal(ks[5], (H, R), jnp.float32) * 0.05,
        "a2": jax.random.normal(ks[6], (R, H), jnp.float32) * 0.05,
        "bm2": jax.random.normal(ks[7], (H, R), jnp.float32) * 0.05,
    }

    x = jax.random.normal(ks[8], (B, S, H), jnp.float32)

    # One-time weight preprocessing (transpose / bf16 cast / scale folding).
    prep = prepare_superrelora_params(params, alpha=ALPHA, r=R)

    fwd = jax.jit(superrelora_model_forward)
    out = jax.block_until_ready(fwd(x, prep))

    ref = _reference_forward(x, params, alpha=ALPHA, r=R)
    assert out.shape == (B, S, H)
    assert jnp.allclose(out, ref, atol=5e-3, rtol=5e-3), "mismatch vs reference"

    # TODO(synk): step_partial_merge / merge_all / unmerge_all are
    # training-time weight/optimizer-state surgery, not part of the forward
    # hot path, and are not implemented here.
    print("KERNEL_OK")
</pallas_src>

<mosaic_0001>
module attributes {stable_mosaic.version = 11 : i64} {
  func.func @_superrelora_linear_kernel(%arg0: i32, %arg1: i32, %arg2: i32, %arg3: memref<16x128xf32, #tpu.memory_space<vmem>>, %arg4: memref<16x8xf32, #tpu.memory_space<vmem>>, %arg5: memref<128x128xbf16, #tpu.memory_space<vmem>>, %arg6: memref<1x128xf32, #tpu.memory_space<vmem>>, %arg7: memref<8x128xf32, #tpu.memory_space<vmem>>, %arg8: memref<16x128xf32, #tpu.memory_space<vmem>>, %arg9: memref<16x128xf32, #tpu.memory_space<vmem>>) attributes {dimension_semantics = [#tpu.dimension_semantics<parallel>, #tpu.dimension_semantics<parallel>, #tpu.dimension_semantics<arbitrary>], iteration_bounds = array<i64: 1, 1, 1>, scalar_prefetch = 0 : i64, scratch_operands = 1 : i64, tpu.core_type = #tpu.core_type<tc>, window_params = [{transform_indices = @transform_0, window_bounds = array<i64: 16, 128>}, {transform_indices = @transform_1, window_bounds = array<i64: 16, 8>}, {transform_indices = @transform_2, window_bounds = array<i64: 128, 128>}, {transform_indices = @transform_3, window_bounds = array<i64: 1, 128>}, {transform_indices = @transform_4, window_bounds = array<i64: 8, 128>}, {transform_indices = @transform_5, window_bounds = array<i64: 16, 128>}]} {
    %c0_i32 = arith.constant 0 : i32
    %0 = arith.cmpi eq, %arg2, %c0_i32 : i32
    %1 = arith.extui %0 : i1 to i32
    %c0_i32_0 = arith.constant 0 : i32
    %2 = arith.cmpi ne, %1, %c0_i32_0 : i32
    scf.if %2 {
      %cst_10 = arith.constant 0.000000e+00 : f32
      %13 = vector.broadcast %cst_10 : f32 to vector<16x128xf32>
      %c0_11 = arith.constant 0 : index
      %c0_12 = arith.constant 0 : index
      %14 = vector.load %arg9[%c0_11, %c0_12] : memref<16x128xf32, #tpu.memory_space<vmem>>, vector<16x128xf32>
      tpu.vector_store %arg9[%c0_11, %c0_12], %13 {strides = array<i32>} : memref<16x128xf32, #tpu.memory_space<vmem>>, vector<16x128xf32>,
    } else {
    }
    %c0 = arith.constant 0 : index
    %c0_1 = arith.constant 0 : index
    %3 = vector.load %arg3[%c0, %c0_1] : memref<16x128xf32, #tpu.memory_space<vmem>>, vector<16x128xf32>
    %4 = arith.truncf %3 : vector<16x128xf32> to vector<16x128xbf16>
    %c0_2 = arith.constant 0 : index
    %c0_3 = arith.constant 0 : index
    %5 = vector.load %arg9[%c0_2, %c0_3] : memref<16x128xf32, #tpu.memory_space<vmem>>, vector<16x128xf32>
    %c0_4 = arith.constant 0 : index
    %c0_5 = arith.constant 0 : index
    %6 = vector.load %arg5[%c0_4, %c0_5] : memref<128x128xbf16, #tpu.memory_space<vmem>>, vector<128x128xbf16>
    %cst = arith.constant dense<0.000000e+00> : vector<16x128xf32>
    %7 = tpu.matmul %4, %6, %cst {dimension_numbers = #tpu.dot_dimension_numbers<[1], [0], [0], [1], [0, 0, 1, 1], [], []>} : vector<16x128xbf16>, vector<128x128xbf16>, vector<16x128xf32> -> vector<16x128xf32>
    %8 = arith.addf %5, %7 : vector<16x128xf32>
    %c0_6 = arith.constant 0 : index
    %c0_7 = arith.constant 0 : index
    %9 = vector.load %arg9[%c0_6, %c0_7] : memref<16x128xf32, #tpu.memory_space<vmem>>, vector<16x128xf32>
    tpu.vector_store %arg9[%c0_6, %c0_7], %8 {strides = array<i32>} : memref<16x128xf32, #tpu.memory_space<vmem>>, vector<16x128xf32>,
    %c0_i32_8 = arith.constant 0 : i32
    %10 = arith.cmpi eq, %arg2, %c0_i32_8 : i32
    %11 = arith.extui %10 : i1 to i32
    %c0_i32_9 = arith.constant 0 : i32
    %12 = arith.cmpi ne, %11, %c0_i32_9 : i32
    scf.if %12 {
      %c0_10 = arith.constant 0 : index
      %c0_11 = arith.constant 0 : index
      %13 = vector.load %arg4[%c0_10, %c0_11] : memref<16x8xf32, #tpu.memory_space<vmem>>, vector<16x8xf32>
      %c0_12 = arith.constant 0 : index
      %c0_13 = arith.constant 0 : index
      %14 = vector.load %arg7[%c0_12, %c0_13] : memref<8x128xf32, #tpu.memory_space<vmem>>, vector<8x128xf32>
      %cst_14 = arith.constant dense<0.000000e+00> : vector<16x128xf32>
      %15 = tpu.matmul %13, %14, %cst_14 {dimension_numbers = #tpu.dot_dimension_numbers<[1], [0], [0], [1], [0, 0, 1, 1], [], []>} : vector<16x8xf32>, vector<8x128xf32>, vector<16x128xf32> -> vector<16x128xf32>
      %c0_15 = arith.constant 0 : index
      %c0_16 = arith.constant 0 : index
      %16 = vector.load %arg9[%c0_15, %c0_16] : memref<16x128xf32, #tpu.memory_space<vmem>>, vector<16x128xf32>
      %17 = arith.addf %16, %15 : vector<16x128xf32>
      %c0_17 = arith.constant 0 : index
      %c0_18 = arith.constant 0 : index
      %18 = vector.load %arg6[%c0_17, %c0_18] : memref<1x128xf32, #tpu.memory_space<vmem>>, vector<1x128xf32>
      %19 = vector.broadcast %18 : vector<1x128xf32> to vector<16x128xf32>
      %20 = arith.addf %17, %19 : vector<16x128xf32>
      %cst_19 = arith.constant 0.000000e+00 : f32
      %21 = vector.broadcast %cst_19 : f32 to vector<16x128xf32>
      %22 = arith.maximumf %20, %21 : vector<16x128xf32>
      %c0_20 = arith.constant 0 : index
      %c0_21 = arith.constant 0 : index
      %23 = vector.load %arg8[%c0_20, %c0_21] : memref<16x128xf32, #tpu.memory_space<vmem>>, vector<16x128xf32>
      tpu.vector_store %arg8[%c0_20, %c0_21], %22 {strides = array<i32>} : memref<16x128xf32, #tpu.memory_space<vmem>>, vector<16x128xf32>,
    } else {
    }
    return
  }
  func.func @transform_0(%arg0: i32, %arg1: i32, %arg2: i32) -> (i32, i32) {
    %c0_i32 = arith.constant 0 : i32
    return %arg0, %arg2 : i32, i32
  }
  func.func @transform_1(%arg0: i32, %arg1: i32, %arg2: i32) -> (i32, i32) {
    %c0_i32 = arith.constant 0 : i32
    %c0_i32_0 = arith.constant 0 : i32
    return %arg0, %c0_i32 : i32, i32
  }
  func.func @transform_2(%arg0: i32, %arg1: i32, %arg2: i32) -> (i32, i32) {
    %c0_i32 = arith.constant 0 : i32
    return %arg2, %arg1 : i32, i32
  }
  func.func @transform_3(%arg0: i32, %arg1: i32, %arg2: i32) -> (i32, i32) {
    %c0_i32 = arith.constant 0 : i32
    %c0_i32_0 = arith.constant 0 : i32
    return %c0_i32, %arg1 : i32, i32
  }
  func.func @transform_4(%arg0: i32, %arg1: i32, %arg2: i32) -> (i32, i32) {
    %c0_i32 = arith.constant 0 : i32
    %c0_i32_0 = arith.constant 0 : i32
    return %c0_i32, %arg1 : i32, i32
  }
  func.func @transform_5(%arg0: i32, %arg1: i32, %arg2: i32) -> (i32, i32) {
    %c0_i32 = arith.constant 0 : i32
    return %arg0, %arg1 : i32, i32
  }
}

module attributes {stable_mosaic.version = 11 : i64} {
  func.func @_superrelora_linear_kernel(%arg0: i32, %arg1: i32, %arg2: i32, %arg3: memref<16x128xf32, #tpu.memory_space<vmem>>, %arg4: memref<16x8xf32, #tpu.memory_space<vmem>>, %arg5: memref<128x128xbf16, #tpu.memory_space<vmem>>, %arg6: memref<1x128xf32, #tpu.memory_space<vmem>>, %arg7: memref<8x128xf32, #tpu.memory_space<vmem>>, %arg8: memref<16x128xf32, #tpu.memory_space<vmem>>, %arg9: memref<16x128xf32, #tpu.memory_space<vmem>>) attributes {dimension_semantics = [#tpu.dimension_semantics<parallel>, #tpu.dimension_semantics<parallel>, #tpu.dimension_semantics<arbitrary>], iteration_bounds = array<i64: 1, 1, 1>, scalar_prefetch = 0 : i64, scratch_operands = 1 : i64, tpu.core_type = #tpu.core_type<tc>, window_params = [{transform_indices = @transform_0, window_bounds = array<i64: 16, 128>}, {transform_indices = @transform_1, window_bounds = array<i64: 16, 8>}, {transform_indices = @transform_2, window_bounds = array<i64: 128, 128>}, {transform_indices = @transform_3, window_bounds = array<i64: 1, 128>}, {transform_indices = @transform_4, window_bounds = array<i64: 8, 128>}, {transform_indices = @transform_5, window_bounds = array<i64: 16, 128>}]} {
    %c0_i32 = arith.constant 0 : i32
    %0 = arith.cmpi eq, %arg2, %c0_i32 : i32
    %1 = arith.extui %0 : i1 to i32
    %c0_i32_0 = arith.constant 0 : i32
    %2 = arith.cmpi ne, %1, %c0_i32_0 : i32
    scf.if %2 {
      %cst_10 = arith.constant 0.000000e+00 : f32
      %13 = vector.broadcast %cst_10 : f32 to vector<16x128xf32>
      %c0_11 = arith.constant 0 : index
      %c0_12 = arith.constant 0 : index
      %14 = vector.load %arg9[%c0_11, %c0_12] : memref<16x128xf32, #tpu.memory_space<vmem>>, vector<16x128xf32>
      tpu.vector_store %arg9[%c0_11, %c0_12], %13 {strides = array<i32>} : memref<16x128xf32, #tpu.memory_space<vmem>>, vector<16x128xf32>,
    } else {
    }
    %c0 = arith.constant 0 : index
    %c0_1 = arith.constant 0 : index
    %3 = vector.load %arg3[%c0, %c0_1] : memref<16x128xf32, #tpu.memory_space<vmem>>, vector<16x128xf32>
    %4 = arith.truncf %3 : vector<16x128xf32> to vector<16x128xbf16>
    %c0_2 = arith.constant 0 : index
    %c0_3 = arith.constant 0 : index
    %5 = vector.load %arg9[%c0_2, %c0_3] : memref<16x128xf32, #tpu.memory_space<vmem>>, vector<16x128xf32>
    %c0_4 = arith.constant 0 : index
    %c0_5 = arith.constant 0 : index
    %6 = vector.load %arg5[%c0_4, %c0_5] : memref<128x128xbf16, #tpu.memory_space<vmem>>, vector<128x128xbf16>
    %cst = arith.constant dense<0.000000e+00> : vector<16x128xf32>
    %7 = tpu.matmul %4, %6, %cst {dimension_numbers = #tpu.dot_dimension_numbers<[1], [0], [0], [1], [0, 0, 1, 1], [], []>} : vector<16x128xbf16>, vector<128x128xbf16>, vector<16x128xf32> -> vector<16x128xf32>
    %8 = arith.addf %5, %7 : vector<16x128xf32>
    %c0_6 = arith.constant 0 : index
    %c0_7 = arith.constant 0 : index
    %9 = vector.load %arg9[%c0_6, %c0_7] : memref<16x128xf32, #tpu.memory_space<vmem>>, vector<16x128xf32>
    tpu.vector_store %arg9[%c0_6, %c0_7], %8 {strides = array<i32>} : memref<16x128xf32, #tpu.memory_space<vmem>>, vector<16x128xf32>,
    %c0_i32_8 = arith.constant 0 : i32
    %10 = arith.cmpi eq, %arg2, %c0_i32_8 : i32
    %11 = arith.extui %10 : i1 to i32
    %c0_i32_9 = arith.constant 0 : i32
    %12 = arith.cmpi ne, %11, %c0_i32_9 : i32
    scf.if %12 {
      %c0_10 = arith.constant 0 : index
      %c0_11 = arith.constant 0 : index
      %13 = vector.load %arg4[%c0_10, %c0_11] : memref<16x8xf32, #tpu.memory_space<vmem>>, vector<16x8xf32>
      %c0_12 = arith.constant 0 : index
      %c0_13 = arith.constant 0 : index
      %14 = vector.load %arg7[%c0_12, %c0_13] : memref<8x128xf32, #tpu.memory_space<vmem>>, vector<8x128xf32>
      %cst_14 = arith.constant dense<0.000000e+00> : vector<16x128xf32>
      %15 = tpu.matmul %13, %14, %cst_14 {dimension_numbers = #tpu.dot_dimension_numbers<[1], [0], [0], [1], [0, 0, 1, 1], [], []>} : vector<16x8xf32>, vector<8x128xf32>, vector<16x128xf32> -> vector<16x128xf32>
      %c0_15 = arith.constant 0 : index
      %c0_16 = arith.constant 0 : index
      %16 = vector.load %arg9[%c0_15, %c0_16] : memref<16x128xf32, #tpu.memory_space<vmem>>, vector<16x128xf32>
      %17 = arith.addf %16, %15 : vector<16x128xf32>
      %c0_17 = arith.constant 0 : index
      %c0_18 = arith.constant 0 : index
      %18 = vector.load %arg6[%c0_17, %c0_18] : memref<1x128xf32, #tpu.memory_space<vmem>>, vector<1x128xf32>
      %19 = vector.broadcast %18 : vector<1x128xf32> to vector<16x128xf32>
      %20 = arith.addf %17, %19 : vector<16x128xf32>
      %c0_19 = arith.constant 0 : index
      %c0_20 = arith.constant 0 : index
      %21 = vector.load %arg8[%c0_19, %c0_20] : memref<16x128xf32, #tpu.memory_space<vmem>>, vector<16x128xf32>
      tpu.vector_store %arg8[%c0_19, %c0_20], %20 {strides = array<i32>} : memref<16x128xf32, #tpu.memory_space<vmem>>, vector<16x128xf32>,
    } else {
    }
    return
  }
  func.func @transform_0(%arg0: i32, %arg1: i32, %arg2: i32) -> (i32, i32) {
    %c0_i32 = arith.constant 0 : i32
    return %arg0, %arg2 : i32, i32
  }
  func.func @transform_1(%arg0: i32, %arg1: i32, %arg2: i32) -> (i32, i32) {
    %c0_i32 = arith.constant 0 : i32
    %c0_i32_0 = arith.constant 0 : i32
    return %arg0, %c0_i32 : i32, i32
  }
  func.func @transform_2(%arg0: i32, %arg1: i32, %arg2: i32) -> (i32, i32) {
    %c0_i32 = arith.constant 0 : i32
    return %arg2, %arg1 : i32, i32
  }
  func.func @transform_3(%arg0: i32, %arg1: i32, %arg2: i32) -> (i32, i32) {
    %c0_i32 = arith.constant 0 : i32
    %c0_i32_0 = arith.constant 0 : i32
    return %c0_i32, %arg1 : i32, i32
  }
  func.func @transform_4(%arg0: i32, %arg1: i32, %arg2: i32) -> (i32, i32) {
    %c0_i32 = arith.constant 0 : i32
    %c0_i32_0 = arith.constant 0 : i32
    return %c0_i32, %arg1 : i32, i32
  }
  func.func @transform_5(%arg0: i32, %arg1: i32, %arg2: i32) -> (i32, i32) {
    %c0_i32 = arith.constant 0 : i32
    return %arg0, %arg1 : i32, i32
  }
}

</mosaic_0001>

<llo_original>
// kernel: superrelora_model_forward.2
$region0: #{superrelora_model_forward.2}
  #allocation0 [shape = 'u32[]', space=smem, size = 0x4, offset = 0x4, fixed_abs, tag = 'smem constant byte address 0x4 - core index']
  #allocation1 [shape = 'u32[72,128]{1,0:T(1,128)}', space=vmem, size = 0x9000, scoped, tag = 'internal scratch']
  #allocation2 [shape = 'f32[16,128]{1,0:T(8,128)}', space=vmem, size = 0x2000, scoped, tag = 'scratch operand']
  %s0 = inlined_call_operand.vmem [shape: f32[16,128], index: 0, kind: input, shape index: {}]
  %s1 = inlined_call_operand.vmem [shape: f32[16,8], index: 1, kind: input, shape index: {}]
  %s2 = inlined_call_operand.vmem [shape: bf16[128,128], index: 2, kind: input, shape index: {}]
  %s3 = inlined_call_operand.vmem [shape: f32[1,128], index: 3, kind: input, shape index: {}]
  %s4 = inlined_call_operand.vmem [shape: f32[8,128], index: 4, kind: input, shape index: {}]
  %s5 = inlined_call_operand.vmem [shape: f32[16,128], index: 5, kind: output, shape index: {}]
  %s6 = sld [smem:[#allocation0]]
  $region38: #{superrelora_model_forward.2} parent=0
    _
  %s8 = ssub.s32 1, %s6
  %s9 = scalar_select 0, %s8, %s6
  // Predicated region
  $region2: #{superrelora_model_forward.2} parent=0 // pred_check
    _
  $region3: #{superrelora_model_forward.2} parent=0 // pred_check_branch
    %11 = sbr.rel (0) target = $region5
  $region4: #{superrelora_model_forward.2} parent=0 // pred_region
    _
  $region5: #{superrelora_model_forward.2} parent=0 // pred_fallthru
    _
  // Predicated region
  $region6: #{superrelora_model_forward.2} parent=0 // pred_check
    _
  $region7: #{superrelora_model_forward.2} parent=0 // pred_check_branch
    %13 = sbr.rel (0) target = $region9
  $region8: #{superrelora_model_forward.2} parent=0 // pred_region
    _
  $region9: #{superrelora_model_forward.2} parent=0 // pred_fallthru
    _
  // Predicated region
  $region10: #{superrelora_model_forward.2} parent=0 // pred_check
    _
  $region11: #{superrelora_model_forward.2} parent=0 // pred_check_branch
    %15 = sbr.rel (0) target = $region13
  $region12: #{superrelora_model_forward.2} parent=0 // pred_region
    _
  $region13: #{superrelora_model_forward.2} parent=0 // pred_fallthru
    _
  // Predicated region
  $region14: #{superrelora_model_forward.2} parent=0 // pred_check
    _
  $region15: #{superrelora_model_forward.2} parent=0 // pred_check_branch
    %17 = sbr.rel (0) target = $region17
  $region16: #{superrelora_model_forward.2} parent=0 // pred_region
    _
  $region17: #{superrelora_model_forward.2} parent=0 // pred_fallthru
    _
  // Predicated region
  $region18: #{superrelora_model_forward.2} parent=0 // pred_check
    _
  $region19: #{superrelora_model_forward.2} parent=0 // pred_check_branch
    %19 = sbr.rel (0) target = $region21
  $region20: #{superrelora_model_forward.2} parent=0 // pred_region
    _
  $region21: #{superrelora_model_forward.2} parent=0 // pred_fallthru
    _
  %p20 = scmp.eq.s32.totalorder 0, 0
  // Predicated region
  $region22: #{superrelora_model_forward.2} parent=0 // pred_check
    %p21 = pneg %p20
  $region23: #{superrelora_model_forward.2} parent=0 // pred_check_branch
    %23 = sbr.rel (%p21) target = $region25
  $region24: #{superrelora_model_forward.2} parent=0 // pred_region
    %24 = vst [vmem:[#allocation2] sm:$0xff] 0.0
    %25 = vst [vmem:[#allocation2 + $0x8] sm:$0xff] 0.0
  $region25: #{superrelora_model_forward.2} parent=0 // pred_fallthru
    _
  %v26 = vld [vmem:[%s0] sm:$0xff]
  %v27 = vld [vmem:[%s0 + $0x8] sm:$0xff]
  %v28 = vpack.c.bf16 %v27, %v26
  %v29 = vld [vmem:[#allocation2] sm:$0xff]
  %v30 = vld [vmem:[#allocation2 + $0x8] sm:$0xff]
  %v31 = vld [vmem:[%s2] sm:$0xf]
  %v32 = vld [vmem:[%s2 + $0x4] sm:$0xf]
  %v33 = vld [vmem:[%s2 + $0x8] sm:$0xf]
  %v34 = vld [vmem:[%s2 + $0xc] sm:$0xf]
  %v35 = vld [vmem:[%s2 + $0x10] sm:$0xf]
  %v36 = vld [vmem:[%s2 + $0x14] sm:$0xf]
  %v37 = vld [vmem:[%s2 + $0x18] sm:$0xf]
  %v38 = vld [vmem:[%s2 + $0x1c] sm:$0xf]
  %v39 = vld [vmem:[%s2 + $0x20] sm:$0xf]
  %v40 = vld [vmem:[%s2 + $0x24] sm:$0xf]
  %v41 = vld [vmem:[%s2 + $0x28] sm:$0xf]
  %v42 = vld [vmem:[%s2 + $0x2c] sm:$0xf]
  %v43 = vld [vmem:[%s2 + $0x30] sm:$0xf]
  %v44 = vld [vmem:[%s2 + $0x34] sm:$0xf]
  %v45 = vld [vmem:[%s2 + $0x38] sm:$0xf]
  %v46 = vld [vmem:[%s2 + $0x3c] sm:$0xf]
  %v63 = vunpack.c.l.b16 %v31
  %v64 = vunpack.c.l.b16 %v32
  %v65 = vunpack.c.l.b16 %v33
  %v66 = vunpack.c.l.b16 %v34
  %v67 = vunpack.c.l.b16 %v35
  %v68 = vunpack.c.l.b16 %v36
  %v69 = vunpack.c.l.b16 %v37
  %v70 = vunpack.c.l.b16 %v38
  %v71 = vunpack.c.l.b16 %v39
  %v72 = vunpack.c.l.b16 %v40
  %v73 = vunpack.c.l.b16 %v41
  %v74 = vunpack.c.l.b16 %v42
  %v75 = vunpack.c.l.b16 %v43
  %v76 = vunpack.c.l.b16 %v44
  %v77 = vunpack.c.l.b16 %v45
  %v78 = vunpack.c.l.b16 %v46
  %v79 = vpack.c.b16 %v64, %v63
  %v80 = vpack.c.b16 %v66, %v65
  %v81 = vpack.c.b16 %v68, %v67
  %v82 = vpack.c.b16 %v70, %v69
  %v83 = vpack.c.b16 %v72, %v71
  %v84 = vpack.c.b16 %v74, %v73
  %v85 = vpack.c.b16 %v76, %v75
  %v86 = vpack.c.b16 %v78, %v77
  %95 = vmatpush.bf16.msra.mxu0 %v86
  %96 = vmatpush.bf16.msra.mxu0 %v85
  %97 = vmatpush.bf16.msra.mxu0 %v84
  %98 = vmatpush.bf16.msra.mxu0 %v83
  %99 = vmatpush.bf16.msra.mxu0 %v82
  %100 = vmatpush.bf16.msra.mxu0 %v81
  %101 = vmatpush.bf16.msra.mxu0 %v80
  %102 = vmatpush.bf16.msra.mxu0 %v79
  %103 = vmatmul.bf16.gmra.mxu0 %v28
  %v104 = vpop.f32.mrf.mxu0
  %v105 = vadd.f32 0.0, %v104
  %v106 = vpop.f32.mrf.mxu0
  %v107 = vadd.f32 0.0, %v106
  %108 = vdwg.mxu0
  %v109 = vadd.f32 %v29, %v105
  %v110 = vadd.f32 %v30, %v107
  %111 = vst [vmem:[#allocation2] sm:$0xff] %v109
  %112 = vst [vmem:[#allocation2 + $0x8] sm:$0xff] %v110
  // Predicated region
  $region26: #{superrelora_model_forward.2} parent=0 // pred_check
    %p113 = pneg %p20
  $region27: #{superrelora_model_forward.2} parent=0 // pred_check_branch
    %115 = sbr.rel (%p113) target = $region29
  $region28: #{superrelora_model_forward.2} parent=0 // pred_region
    %v116 = vld [vmem:[%s1] sm:$0xff]
    %v117 = vld [vmem:[%s1 + $0x8] sm:$0xff]
    %v118 = vld [vmem:[%s4] sm:$0xff]
    %vm119 = vcmask 64512
    %v121 = vsel %vm119, %v116, 0
    %v124 = vsel %vm119, %v117, 0
    %126 = vmatpush.msra.mxu0 0.0
    %127 = vmatpush.msra.mxu0 0.0
    %128 = vmatpush.msra.mxu0 0.0
    %129 = vmatpush.msra.mxu0 0.0
    %130 = vmatpush.msra.mxu0 0.0
    %131 = vmatpush.msra.mxu0 0.0
    %132 = vmatpush.msra.mxu0 0.0
    %133 = vmatpush.msra.mxu0 0.0
    %134 = vmatpush.msra.mxu0 0.0
    %135 = vmatpush.msra.mxu0 0.0
    %136 = vmatpush.msra.mxu0 0.0
    %137 = vmatpush.msra.mxu0 0.0
    %138 = vmatpush.msra.mxu0 0.0
    %139 = vmatpush.msra.mxu0 0.0
    %140 = vmatpush.msra.mxu0 0.0
    %141 = vmatpush.msra.mxu0 %v118
    %142 = vmatmul.f32.gmra.mxu0 %v121
    %v143 = vpop.f32.mrf.mxu0
    %v144 = vadd.f32 0.0, %v143
    %145 = vmatmul.f32.gmra.mxu0 %v124
    %v146 = vpop.f32.mrf.mxu0
    %v147 = vadd.f32 0.0, %v146
    %148 = vdwg.mxu0
    %v149 = vld [vmem:[#allocation2] sm:$0xff]
    %v150 = vld [vmem:[#allocation2 + $0x8] sm:$0xff]
    %v151 = vadd.f32 %v149, %v144
    %v152 = vadd.f32 %v150, %v147
    %v153 = vld [vmem:[%s3] sm:$0x1]
    %v155 = vperm.slane %v153, 0
    %v157 = vadd.f32 %v151, %v155
    %v158 = vadd.f32 %v152, %v155
    %v159 = vmax.f32 %v157, 0.0
    %v160 = vmax.f32 %v158, 0.0
    %161 = vst [vmem:[%s5] sm:$0xff] %v159
    %162 = vst [vmem:[%s5 + $0x8] sm:$0xff] %v160
  $region29: #{superrelora_model_forward.2} parent=0 // pred_fallthru
    _
  // Predicated region
  $region30: #{superrelora_model_forward.2} parent=0 // pred_check
    _
  $region31: #{superrelora_model_forward.2} parent=0 // pred_check_branch
    %164 = sbr.rel (0) target = $region33
  $region32: #{superrelora_model_forward.2} parent=0 // pred_region
    _
  $region33: #{superrelora_model_forward.2} parent=0 // pred_fallthru
    _
  // Predicated region
  $region34: #{superrelora_model_forward.2} parent=0 // pred_check
    _
  $region35: #{superrelora_model_forward.2} parent=0 // pred_check_branch
    %166 = sbr.rel (0) target = $region37
  $region36: #{superrelora_model_forward.2} parent=0 // pred_region
    _
  $region37: #{superrelora_model_forward.2} parent=0 // pred_fallthru
    _

// kernel: superrelora_model_forward.3
$region0: #{superrelora_model_forward.3}
  #allocation0 [shape = 'u32[]', space=smem, size = 0x4, offset = 0x4, fixed_abs, tag = 'smem constant byte address 0x4 - core index']
  #allocation1 [shape = 'u32[72,128]{1,0:T(1,128)}', space=vmem, size = 0x9000, scoped, tag = 'internal scratch']
  #allocation2 [shape = 'f32[16,128]{1,0:T(8,128)}', space=vmem, size = 0x2000, scoped, tag = 'scratch operand']
  %s0 = inlined_call_operand.vmem [shape: f32[16,128], index: 0, kind: input, shape index: {}]
  %s1 = inlined_call_operand.vmem [shape: f32[16,8], index: 1, kind: input, shape index: {}]
  %s2 = inlined_call_operand.vmem [shape: bf16[128,128], index: 2, kind: input, shape index: {}]
  %s3 = inlined_call_operand.vmem [shape: f32[1,128], index: 3, kind: input, shape index: {}]
  %s4 = inlined_call_operand.vmem [shape: f32[8,128], index: 4, kind: input, shape index: {}]
  %s5 = inlined_call_operand.vmem [shape: f32[16,128], index: 5, kind: output, shape index: {}]
  %s6 = sld [smem:[#allocation0]]
  $region38: #{superrelora_model_forward.3} parent=0
    _
  %s8 = ssub.s32 1, %s6
  %s9 = scalar_select 0, %s8, %s6
  // Predicated region
  $region2: #{superrelora_model_forward.3} parent=0 // pred_check
    _
  $region3: #{superrelora_model_forward.3} parent=0 // pred_check_branch
    %11 = sbr.rel (0) target = $region5
  $region4: #{superrelora_model_forward.3} parent=0 // pred_region
    _
  $region5: #{superrelora_model_forward.3} parent=0 // pred_fallthru
    _
  // Predicated region
  $region6: #{superrelora_model_forward.3} parent=0 // pred_check
    _
  $region7: #{superrelora_model_forward.3} parent=0 // pred_check_branch
    %13 = sbr.rel (0) target = $region9
  $region8: #{superrelora_model_forward.3} parent=0 // pred_region
    _
  $region9: #{superrelora_model_forward.3} parent=0 // pred_fallthru
    _
  // Predicated region
  $region10: #{superrelora_model_forward.3} parent=0 // pred_check
    _
  $region11: #{superrelora_model_forward.3} parent=0 // pred_check_branch
    %15 = sbr.rel (0) target = $region13
  $region12: #{superrelora_model_forward.3} parent=0 // pred_region
    _
  $region13: #{superrelora_model_forward.3} parent=0 // pred_fallthru
    _
  // Predicated region
  $region14: #{superrelora_model_forward.3} parent=0 // pred_check
    _
  $region15: #{superrelora_model_forward.3} parent=0 // pred_check_branch
    %17 = sbr.rel (0) target = $region17
  $region16: #{superrelora_model_forward.3} parent=0 // pred_region
    _
  $region17: #{superrelora_model_forward.3} parent=0 // pred_fallthru
    _
  // Predicated region
  $region18: #{superrelora_model_forward.3} parent=0 // pred_check
    _
  $region19: #{superrelora_model_forward.3} parent=0 // pred_check_branch
    %19 = sbr.rel (0) target = $region21
  $region20: #{superrelora_model_forward.3} parent=0 // pred_region
    _
  $region21: #{superrelora_model_forward.3} parent=0 // pred_fallthru
    _
  %p20 = scmp.eq.s32.totalorder 0, 0
  // Predicated region
  $region22: #{superrelora_model_forward.3} parent=0 // pred_check
    %p21 = pneg %p20
  $region23: #{superrelora_model_forward.3} parent=0 // pred_check_branch
    %23 = sbr.rel (%p21) target = $region25
  $region24: #{superrelora_model_forward.3} parent=0 // pred_region
    %24 = vst [vmem:[#allocation2] sm:$0xff] 0.0
    %25 = vst [vmem:[#allocation2 + $0x8] sm:$0xff] 0.0
  $region25: #{superrelora_model_forward.3} parent=0 // pred_fallthru
    _
  %v26 = vld [vmem:[%s0] sm:$0xff]
  %v27 = vld [vmem:[%s0 + $0x8] sm:$0xff]
  %v28 = vpack.c.bf16 %v27, %v26
  %v29 = vld [vmem:[#allocation2] sm:$0xff]
  %v30 = vld [vmem:[#allocation2 + $0x8] sm:$0xff]
  %v31 = vld [vmem:[%s2] sm:$0xf]
  %v32 = vld [vmem:[%s2 + $0x4] sm:$0xf]
  %v33 = vld [vmem:[%s2 + $0x8] sm:$0xf]
  %v34 = vld [vmem:[%s2 + $0xc] sm:$0xf]
  %v35 = vld [vmem:[%s2 + $0x10] sm:$0xf]
  %v36 = vld [vmem:[%s2 + $0x14] sm:$0xf]
  %v37 = vld [vmem:[%s2 + $0x18] sm:$0xf]
  %v38 = vld [vmem:[%s2 + $0x1c] sm:$0xf]
  %v39 = vld [vmem:[%s2 + $0x20] sm:$0xf]
  %v40 = vld [vmem:[%s2 + $0x24] sm:$0xf]
  %v41 = vld [vmem:[%s2 + $0x28] sm:$0xf]
  %v42 = vld [vmem:[%s2 + $0x2c] sm:$0xf]
  %v43 = vld [vmem:[%s2 + $0x30] sm:$0xf]
  %v44 = vld [vmem:[%s2 + $0x34] sm:$0xf]
  %v45 = vld [vmem:[%s2 + $0x38] sm:$0xf]
  %v46 = vld [vmem:[%s2 + $0x3c] sm:$0xf]
  %v63 = vunpack.c.l.b16 %v31
  %v64 = vunpack.c.l.b16 %v32
  %v65 = vunpack.c.l.b16 %v33
  %v66 = vunpack.c.l.b16 %v34
  %v67 = vunpack.c.l.b16 %v35
  %v68 = vunpack.c.l.b16 %v36
  %v69 = vunpack.c.l.b16 %v37
  %v70 = vunpack.c.l.b16 %v38
  %v71 = vunpack.c.l.b16 %v39
  %v72 = vunpack.c.l.b16 %v40
  %v73 = vunpack.c.l.b16 %v41
  %v74 = vunpack.c.l.b16 %v42
  %v75 = vunpack.c.l.b16 %v43
  %v76 = vunpack.c.l.b16 %v44
  %v77 = vunpack.c.l.b16 %v45
  %v78 = vunpack.c.l.b16 %v46
  %v79 = vpack.c.b16 %v64, %v63
  %v80 = vpack.c.b16 %v66, %v65
  %v81 = vpack.c.b16 %v68, %v67
  %v82 = vpack.c.b16 %v70, %v69
  %v83 = vpack.c.b16 %v72, %v71
  %v84 = vpack.c.b16 %v74, %v73
  %v85 = vpack.c.b16 %v76, %v75
  %v86 = vpack.c.b16 %v78, %v77
  %95 = vmatpush.bf16.msra.mxu0 %v86
  %96 = vmatpush.bf16.msra.mxu0 %v85
  %97 = vmatpush.bf16.msra.mxu0 %v84
  %98 = vmatpush.bf16.msra.mxu0 %v83
  %99 = vmatpush.bf16.msra.mxu0 %v82
  %100 = vmatpush.bf16.msra.mxu0 %v81
  %101 = vmatpush.bf16.msra.mxu0 %v80
  %102 = vmatpush.bf16.msra.mxu0 %v79
  %103 = vmatmul.bf16.gmra.mxu0 %v28
  %v104 = vpop.f32.mrf.mxu0
  %v105 = vadd.f32 0.0, %v104
  %v106 = vpop.f32.mrf.mxu0
  %v107 = vadd.f32 0.0, %v106
  %108 = vdwg.mxu0
  %v109 = vadd.f32 %v29, %v105
  %v110 = vadd.f32 %v30, %v107
  %111 = vst [vmem:[#allocation2] sm:$0xff] %v109
  %112 = vst [vmem:[#allocation2 + $0x8] sm:$0xff] %v110
  // Predicated region
  $region26: #{superrelora_model_forward.3} parent=0 // pred_check
    %p113 = pneg %p20
  $region27: #{superrelora_model_forward.3} parent=0 // pred_check_branch
    %115 = sbr.rel (%p113) target = $region29
  $region28: #{superrelora_model_forward.3} parent=0 // pred_region
    %v116 = vld [vmem:[%s1] sm:$0xff]
    %v117 = vld [vmem:[%s1 + $0x8] sm:$0xff]
    %v118 = vld [vmem:[%s4] sm:$0xff]
    %vm119 = vcmask 64512
    %v121 = vsel %vm119, %v116, 0
    %v124 = vsel %vm119, %v117, 0
    %126 = vmatpush.msra.mxu0 0.0
    %127 = vmatpush.msra.mxu0 0.0
    %128 = vmatpush.msra.mxu0 0.0
    %129 = vmatpush.msra.mxu0 0.0
    %130 = vmatpush.msra.mxu0 0.0
    %131 = vmatpush.msra.mxu0 0.0
    %132 = vmatpush.msra.mxu0 0.0
    %133 = vmatpush.msra.mxu0 0.0
    %134 = vmatpush.msra.mxu0 0.0
    %135 = vmatpush.msra.mxu0 0.0
    %136 = vmatpush.msra.mxu0 0.0
    %137 = vmatpush.msra.mxu0 0.0
    %138 = vmatpush.msra.mxu0 0.0
    %139 = vmatpush.msra.mxu0 0.0
    %140 = vmatpush.msra.mxu0 0.0
    %141 = vmatpush.msra.mxu0 %v118
    %142 = vmatmul.f32.gmra.mxu0 %v121
    %v143 = vpop.f32.mrf.mxu0
    %v144 = vadd.f32 0.0, %v143
    %145 = vmatmul.f32.gmra.mxu0 %v124
    %v146 = vpop.f32.mrf.mxu0
    %v147 = vadd.f32 0.0, %v146
    %148 = vdwg.mxu0
    %v149 = vld [vmem:[#allocation2] sm:$0xff]
    %v150 = vld [vmem:[#allocation2 + $0x8] sm:$0xff]
    %v151 = vadd.f32 %v149, %v144
    %v152 = vadd.f32 %v150, %v147
    %v153 = vld [vmem:[%s3] sm:$0x1]
    %v155 = vperm.slane %v153, 0
    %v157 = vadd.f32 %v151, %v155
    %v158 = vadd.f32 %v152, %v155
    %159 = vst [vmem:[%s5] sm:$0xff] %v157
    %160 = vst [vmem:[%s5 + $0x8] sm:$0xff] %v158
  $region29: #{superrelora_model_forward.3} parent=0 // pred_fallthru
    _
  // Predicated region
  $region30: #{superrelora_model_forward.3} parent=0 // pred_check
    _
  $region31: #{superrelora_model_forward.3} parent=0 // pred_check_branch
    %162 = sbr.rel (0) target = $region33
  $region32: #{superrelora_model_forward.3} parent=0 // pred_region
    _
  $region33: #{superrelora_model_forward.3} parent=0 // pred_fallthru
    _
  // Predicated region
  $region34: #{superrelora_model_forward.3} parent=0 // pred_check
    _
  $region35: #{superrelora_model_forward.3} parent=0 // pred_check_branch
    %164 = sbr.rel (0) target = $region37
  $region36: #{superrelora_model_forward.3} parent=0 // pred_region
    _
  $region37: #{superrelora_model_forward.3} parent=0 // pred_fallthru
    _

</llo_original>
